<compile_context>
chip_gen: v7x
topology: tpu7x:2x2x1
jax: 0.10.0
libtpu: 0.0.40
codegen_flags: <defaults>
</compile_context>

<pallas_src>
import jax
import jax.numpy as jnp
from jax.experimental import pallas as pl
from jax.experimental.pallas import tpu as pltpu


def _attn_general_kernel(h_ref, b_ref, w_ref, enc_ref, out_ref,
                         g_ref, off_ref, e_ref):
    # h_ref:   (TB, H)     hidden rows for this batch tile
    # b_ref:   (1, H)      nn.Linear bias
    # w_ref:   (H, H)      nn.Linear weight, PyTorch (out, in) layout
    # enc_ref: (TL, TB, H) encoder-output tile, seq-first (native layout)
    # out_ref: (L, TB)     attention weights (L-major; wrapper transposes)
    # g_ref:   (TB, H) f32 scratch: projected hidden  g = h @ W
    # off_ref: (1, TB) f32 scratch: bias energy       off = h . bias
    # e_ref:   (L, TB) f32 scratch: energies accumulated across L tiles
    li = pl.program_id(1)
    tl = enc_ref.shape[0]

    # Once per batch tile: project the hidden vector, not every encoder output.
    #   energy[b, l] = h[b].(W e[l,b] + bias) = (h[b] @ W).e[l,b] + h[b].bias
    @pl.when(li == 0)
    def _():
        g_ref[...] = jnp.dot(h_ref[...], w_ref[...],
                             preferred_element_type=jnp.float32)          # (TB, H)
        off_ref[...] = jax.lax.dot_general(       # (1,H) x (TB,H)^T -> (1, TB)
            b_ref[...], h_ref[...],
            dimension_numbers=(((1,), (1,)), ((), ())),
            preferred_element_type=jnp.float32)

    # Per L tile: energies via VPU multiply + reduce over H (lane axis).
    enc = enc_ref[...]                                          # (TL, TB, H)
    e = jnp.sum(enc * g_ref[...][None, :, :], axis=-1)          # (TL, TB)
    e = e + off_ref[...]                                        # + h . bias
    start = pl.multiple_of(li * tl, tl)
    e_ref[pl.ds(start, tl), :] = e

    # After the last L tile: softmax over L (axis 0) for the whole batch tile.
    @pl.when(li == pl.num_programs(1) - 1)
    def _():
        ee = e_ref[...]                                         # (L, TB)
        m = jnp.max(ee, axis=0, keepdims=True)                  # (1, TB)
        p = jnp.exp(ee - m)
        s = jnp.sum(p, axis=0, keepdims=True)                   # (1, TB)
        # EUP approximate reciprocal + two Newton refinements: keeps full f32
        # accuracy while the reciprocal itself issues on the otherwise-idle EUP.
        r = pl.reciprocal(s, approx=True)
        r = r * (2.0 - s * r)
        r = r * (2.0 - s * r)
        out_ref[...] = (p * r).astype(out_ref.dtype)


def _pick_batch_tile(b):
    # Last-two block dims must be a multiple of 8 or equal the full dim; only
    # return divisors of B so no masked / ragged tiles are needed.  128 first:
    # lane-dense output block + larger contiguous DMA runs when B is large.
    for tb in (128, 64, 32, 16, 8):
        if b % tb == 0:
            return tb
    return b


def _pick_seq_tile(l, tb, h, itemsize=4, budget_bytes=8 * 1024 * 1024):
    # Tile the sequence only when one (TL, TB, H) block would be large (the
    # block is double-buffered, so ~2x this budget of VMEM is consumed).
    # Tiles are multiples of 128 (aligned sublane slices of the energy slab)
    # that divide L exactly.
    if l * tb * h * itemsize <= budget_bytes:
        return l
    for tl in (2048, 1024, 512, 256, 128):
        if l % tl == 0 and tl * tb * h * itemsize <= budget_bytes:
            return tl
    return l


def attn_general(hidden, encoder_outputs, weight, bias):
    """hidden: (1,B,H); encoder_outputs: (L,B,H); weight: (H,H); bias: (H,).
    Returns (B, 1, L) attention weights == Attn('general', H).forward(...)."""
    L, B, H = encoder_outputs.shape
    h2d = hidden.reshape(B, H)            # free reshape, no transpose
    bias2d = bias.reshape(1, H)

    tb = _pick_batch_tile(B)
    tl = _pick_seq_tile(L, tb, H, itemsize=encoder_outputs.dtype.itemsize)
    nb = B // tb
    nl = L // tl

    out_lb = pl.pallas_call(
        _attn_general_kernel,
        out_shape=jax.ShapeDtypeStruct((L, B), jnp.float32),
        grid_spec=pltpu.PrefetchScalarGridSpec(
            num_scalar_prefetch=0,
            grid=(nb, nl),
            in_specs=[
                pl.BlockSpec((tb, H), lambda bi, li: (bi, 0)),           # hidden
                pl.BlockSpec((1, H), lambda bi, li: (0, 0)),             # bias
                pl.BlockSpec((H, H), lambda bi, li: (0, 0)),             # weight
                pl.BlockSpec((tl, tb, H), lambda bi, li: (li, bi, 0)),   # enc (L,B,H)
            ],
            out_specs=pl.BlockSpec((L, tb), lambda bi, li: (0, bi)),
            scratch_shapes=[
                pltpu.VMEM((tb, H), jnp.float32),   # g = h @ W
                pltpu.VMEM((1, tb), jnp.float32),   # off = h . bias
                pltpu.VMEM((L, tb), jnp.float32),   # energy slab
            ],
        ),
        compiler_params=pltpu.CompilerParams(
            dimension_semantics=("parallel", "arbitrary"),
            vmem_limit_bytes=48 * 1024 * 1024),
    )(h2d, bias2d, weight, encoder_outputs)

    # (L, B) -> (B, 1, L): tiny layout fix (L*B*4 bytes, H-times smaller than the
    # encoder tensor whose wrapper-side transpose was removed).
    return jnp.transpose(out_lb)[:, None, :]


def _reference(hidden, encoder_outputs, weight, bias):
    # pure-JAX reference of the PyTorch forward (method='general')
    L, B, H = encoder_outputs.shape
    h2d = hidden.reshape(B, H)
    enc_t = jnp.transpose(encoder_outputs, (1, 0, 2))            # (B, L, H)
    proj = jnp.einsum("blh,oh->blo", enc_t, weight) + bias       # (B, L, H)
    e = jnp.sum(proj * h2d[:, None, :], axis=-1)                 # (B, L)
    return jax.nn.softmax(e, axis=-1)[:, None, :]                # (B, 1, L)


if __name__ == "__main__":
    B, L, H = 2, 8, 32
    key = jax.random.PRNGKey(0)
    k1, k2, k3, k4 = jax.random.split(key, 4)

    hidden = jax.random.normal(k1, (1, B, H), dtype=jnp.float32)
    encoder_outputs = jax.random.normal(k2, (L, B, H), dtype=jnp.float32)

    # Deterministic nn.Linear(H, H) parameters (uniform(-1/sqrt(H), 1/sqrt(H)))
    bound = 1.0 / (H ** 0.5)
    weight = jax.random.uniform(k3, (H, H), minval=-bound, maxval=bound,
                                dtype=jnp.float32)
    bias = jax.random.uniform(k4, (H,), minval=-bound, maxval=bound,
                              dtype=jnp.float32)

    out = attn_general(hidden, encoder_outputs, weight, bias)
    out = jax.block_until_ready(out)

    ref = _reference(hidden, encoder_outputs, weight, bias)
    assert out.shape == (B, 1, L), out.shape
    assert jnp.allclose(out, ref, atol=1e-5, rtol=1e-5), "mismatch vs reference"
    print("KERNEL_OK")
</pallas_src>

<mosaic_0001>
module attributes {stable_mosaic.version = 11 : i64} {
  func.func @_attn_general_kernel(%arg0: i32, %arg1: i32, %arg2: memref<2x32xf32, #tpu.memory_space<vmem>>, %arg3: memref<1x32xf32, #tpu.memory_space<vmem>>, %arg4: memref<32x32xf32, #tpu.memory_space<vmem>>, %arg5: memref<8x2x32xf32, #tpu.memory_space<vmem>>, %arg6: memref<8x2xf32, #tpu.memory_space<vmem>>, %arg7: memref<2x32xf32, #tpu.memory_space<vmem>>, %arg8: memref<1x2xf32, #tpu.memory_space<vmem>>, %arg9: memref<8x2xf32, #tpu.memory_space<vmem>>) attributes {dimension_semantics = [#tpu.dimension_semantics<parallel>, #tpu.dimension_semantics<arbitrary>], iteration_bounds = array<i64: 1, 1>, scalar_prefetch = 0 : i64, scratch_operands = 3 : i64, tpu.core_type = #tpu.core_type<tc>, window_params = [{transform_indices = @transform_0, window_bounds = array<i64: 2, 32>}, {pipeline_mode = #tpu.pipeline_mode<synchronous>, transform_indices = @transform_1, window_bounds = array<i64: 1, 32>}, {pipeline_mode = #tpu.pipeline_mode<synchronous>, transform_indices = @transform_2, window_bounds = array<i64: 32, 32>}, {transform_indices = @transform_3, window_bounds = array<i64: 8, 2, 32>}, {transform_indices = @transform_4, window_bounds = array<i64: 8, 2>}]} {
    %c0_i32 = arith.constant 0 : i32
    %0 = arith.cmpi eq, %arg1, %c0_i32 : i32
    %1 = arith.extui %0 : i1 to i32
    %c0_i32_0 = arith.constant 0 : i32
    %2 = arith.cmpi ne, %1, %c0_i32_0 : i32
    scf.if %2 {
      %c0_10 = arith.constant 0 : index
      %c0_11 = arith.constant 0 : index
      %19 = vector.load %arg2[%c0_10, %c0_11] : memref<2x32xf32, #tpu.memory_space<vmem>>, vector<2x32xf32>
      %c0_12 = arith.constant 0 : index
      %c0_13 = arith.constant 0 : index
      %20 = vector.load %arg4[%c0_12, %c0_13] : memref<32x32xf32, #tpu.memory_space<vmem>>, vector<32x32xf32>
      %cst_14 = arith.constant dense<0.000000e+00> : vector<2x32xf32>
      %21 = tpu.matmul %19, %20, %cst_14 {dimension_numbers = #tpu.dot_dimension_numbers<[1], [0], [0], [1], [0, 0, 1, 1], [], []>} : vector<2x32xf32>, vector<32x32xf32>, vector<2x32xf32> -> vector<2x32xf32>
      %c0_15 = arith.constant 0 : index
      %c0_16 = arith.constant 0 : index
      %22 = vector.load %arg7[%c0_15, %c0_16] : memref<2x32xf32, #tpu.memory_space<vmem>>, vector<2x32xf32>
      tpu.vector_store %arg7[%c0_15, %c0_16], %21 {strides = array<i32>} : memref<2x32xf32, #tpu.memory_space<vmem>>, vector<2x32xf32>,
      %c0_17 = arith.constant 0 : index
      %c0_18 = arith.constant 0 : index
      %23 = vector.load %arg3[%c0_17, %c0_18] : memref<1x32xf32, #tpu.memory_space<vmem>>, vector<1x32xf32>
      %c0_19 = arith.constant 0 : index
      %c0_20 = arith.constant 0 : index
      %24 = vector.load %arg2[%c0_19, %c0_20] : memref<2x32xf32, #tpu.memory_space<vmem>>, vector<2x32xf32>
      %cst_21 = arith.constant dense<0.000000e+00> : vector<1x2xf32>
      %25 = tpu.matmul %23, %24, %cst_21 {dimension_numbers = #tpu.dot_dimension_numbers<[1], [1], [0], [0], [0, 0, 1, 0], [], []>} : vector<1x32xf32>, vector<2x32xf32>, vector<1x2xf32> -> vector<1x2xf32>
      %c0_22 = arith.constant 0 : index
      %c0_23 = arith.constant 0 : index
      %26 = vector.load %arg8[%c0_22, %c0_23] : memref<1x2xf32, #tpu.memory_space<vmem>>, vector<1x2xf32>
      tpu.vector_store %arg8[%c0_22, %c0_23], %25 {strides = array<i32>} : memref<1x2xf32, #tpu.memory_space<vmem>>, vector<1x2xf32>,
    } else {
    }
    %c0 = arith.constant 0 : index
    %c0_1 = arith.constant 0 : index
    %c0_2 = arith.constant 0 : index
    %3 = vector.load %arg5[%c0, %c0_1, %c0_2] : memref<8x2x32xf32, #tpu.memory_space<vmem>>, vector<8x2x32xf32>
    %c0_3 = arith.constant 0 : index
    %c0_4 = arith.constant 0 : index
    %4 = vector.load %arg7[%c0_3, %c0_4] : memref<2x32xf32, #tpu.memory_space<vmem>>, vector<2x32xf32>
    %5 = vector.shape_cast %4 : vector<2x32xf32> to vector<1x2x32xf32>
    %6 = vector.broadcast %5 : vector<1x2x32xf32> to vector<8x2x32xf32>
    %7 = arith.mulf %3, %6 : vector<8x2x32xf32>
    %cst = arith.constant dense<0.000000e+00> : vector<8x2xf32>
    %8 = vector.multi_reduction <add>, %7, %cst [2] : vector<8x2x32xf32> to vector<8x2xf32>
    %c0_5 = arith.constant 0 : index
    %c0_6 = arith.constant 0 : index
    %9 = vector.load %arg8[%c0_5, %c0_6] : memref<1x2xf32, #tpu.memory_space<vmem>>, vector<1x2xf32>
    %10 = vector.broadcast %9 : vector<1x2xf32> to vector<8x2xf32>
    %11 = arith.addf %8, %10 : vector<8x2xf32>
    %c8_i32 = arith.constant 8 : i32
    %12 = arith.muli %arg1, %c8_i32 : i32
    %13 = tpu.assume_multiple %12, 8 : i32
    %14 = arith.index_cast %13 : i32 to index
    %c0_7 = arith.constant 0 : index
    %15 = vector.load %arg9[%14, %c0_7] : memref<8x2xf32, #tpu.memory_space<vmem>>, vector<8x2xf32>
    tpu.vector_store %arg9[%14, %c0_7], %11 {strides = array<i32>} : memref<8x2xf32, #tpu.memory_space<vmem>>, vector<8x2xf32>,
    %c0_i32_8 = arith.constant 0 : i32
    %16 = arith.cmpi eq, %arg1, %c0_i32_8 : i32
    %17 = arith.extui %16 : i1 to i32
    %c0_i32_9 = arith.constant 0 : i32
    %18 = arith.cmpi ne, %17, %c0_i32_9 : i32
    scf.if %18 {
      %c0_10 = arith.constant 0 : index
      %c0_11 = arith.constant 0 : index
      %19 = vector.load %arg9[%c0_10, %c0_11] : memref<8x2xf32, #tpu.memory_space<vmem>>, vector<8x2xf32>
      %cst_12 = arith.constant dense<0xFF800000> : vector<2xf32>
      %20 = vector.multi_reduction <maximumf>, %19, %cst_12 [0] : vector<8x2xf32> to vector<2xf32>
      %21 = vector.shape_cast %20 : vector<2xf32> to vector<1x2xf32>
      %22 = vector.broadcast %21 : vector<1x2xf32> to vector<8x2xf32>
      %23 = arith.subf %19, %22 : vector<8x2xf32>
      %24 = math.exp %23 : vector<8x2xf32>
      %cst_13 = arith.constant dense<0.000000e+00> : vector<2xf32>
      %25 = vector.multi_reduction <add>, %24, %cst_13 [0] : vector<8x2xf32> to vector<2xf32>
      %26 = vector.shape_cast %25 : vector<2xf32> to vector<1x2xf32>
      %27 = tpu.reciprocal %26 {approx = true} : vector<1x2xf32> -> vector<1x2xf32>
      %28 = arith.mulf %26, %27 : vector<1x2xf32>
      %cst_14 = arith.constant 2.000000e+00 : f32
      %29 = vector.broadcast %cst_14 : f32 to vector<1x2xf32>
      %30 = arith.subf %29, %28 : vector<1x2xf32>
      %31 = arith.mulf %27, %30 : vector<1x2xf32>
      %32 = arith.mulf %26, %31 : vector<1x2xf32>
      %cst_15 = arith.constant 2.000000e+00 : f32
      %33 = vector.broadcast %cst_15 : f32 to vector<1x2xf32>
      %34 = arith.subf %33, %32 : vector<1x2xf32>
      %35 = arith.mulf %31, %34 : vector<1x2xf32>
      %36 = vector.broadcast %35 : vector<1x2xf32> to vector<8x2xf32>
      %37 = arith.mulf %24, %36 : vector<8x2xf32>
      %c0_16 = arith.constant 0 : index
      %c0_17 = arith.constant 0 : index
      %38 = vector.load %arg6[%c0_16, %c0_17] : memref<8x2xf32, #tpu.memory_space<vmem>>, vector<8x2xf32>
      tpu.vector_store %arg6[%c0_16, %c0_17], %37 {strides = array<i32>} : memref<8x2xf32, #tpu.memory_space<vmem>>, vector<8x2xf32>,
    } else {
    }
    return
  }
  func.func @transform_0(%arg0: i32, %arg1: i32) -> (i32, i32) {
    %c0_i32 = arith.constant 0 : i32
    %c0_i32_0 = arith.constant 0 : i32
    return %arg0, %c0_i32 : i32, i32
  }
  func.func @transform_1(%arg0: i32, %arg1: i32) -> (i32, i32) {
    %c0_i32 = arith.constant 0 : i32
    %c0_i32_0 = arith.constant 0 : i32
    %c0_i32_1 = arith.constant 0 : i32
    return %c0_i32, %c0_i32_0 : i32, i32
  }
  func.func @transform_2(%arg0: i32, %arg1: i32) -> (i32, i32) {
    %c0_i32 = arith.constant 0 : i32
    %c0_i32_0 = arith.constant 0 : i32
    %c0_i32_1 = arith.constant 0 : i32
    return %c0_i32, %c0_i32_0 : i32, i32
  }
  func.func @transform_3(%arg0: i32, %arg1: i32) -> (i32, i32, i32) {
    %c0_i32 = arith.constant 0 : i32
    %c0_i32_0 = arith.constant 0 : i32
    return %arg1, %arg0, %c0_i32 : i32, i32, i32
  }
  func.func @transform_4(%arg0: i32, %arg1: i32) -> (i32, i32) {
    %c0_i32 = arith.constant 0 : i32
    %c0_i32_0 = arith.constant 0 : i32
    return %c0_i32, %arg0 : i32, i32
  }
}

</mosaic_0001>

<llo_original>
// kernel: tpu_custom_call.1
$region0: #{tpu_custom_call.1}
  #allocation0 [shape = 'u32[]', space=smem, size = 0x4, offset = 0x4, fixed_abs, tag = 'smem constant byte address 0x4 - core index']
  #allocation1 [shape = 'u32[144,128]{1,0:T(1,128)}', space=vmem, size = 0x12000, scoped, tag = 'internal scratch']
  #allocation2 [shape = 'f32[2,32]{1,0:T(2,128)}', space=vmem, size = 0x400, scoped, tag = 'scratch operand']
  #allocation3 [shape = 'f32[1,2]{1,0:T(1,128)}', space=vmem, size = 0x200, scoped, tag = 'scratch operand']
  #allocation4 [shape = 'f32[8,2]{1,0:T(8,128)}', space=vmem, size = 0x1000, scoped, tag = 'scratch operand']
  %s0 = inlined_call_operand.hbm [shape: f32[2,32], index: 0, kind: input, shape index: {}]
  %s1 = inlined_call_operand.vmem [shape: f32[1,32], index: 1, kind: input, shape index: {}]
  %s2 = inlined_call_operand.hbm [shape: f32[32,32], index: 2, kind: input, shape index: {}]
  %s3 = inlined_call_operand.hbm [shape: f32[8,2,32], index: 3, kind: input, shape index: {}]
  %s4 = inlined_call_operand.vmem [shape: f32[8,2], index: 4, kind: output, shape index: {}]
  %s5 = sld [smem:[#allocation0]]
  $region46: #{tpu_custom_call.1} parent=0
    _
  %s7 = ssub.s32 1, %s5
  %s8 = scalar_select 0, %s7, %s5
  $region1: #{tpu_custom_call.1} parent=0
    #allocation5 [shape = 'u8[1024]{0}', space=vmem, size = 0x400, scoped, tag = 'input window, operand 0, single buffered']
    #allocation6 [shape = 's32[1]{0}', space=sflag, size = 0x4, scoped, tag = 'scoped memory for tpu_custom_call.1']
    #allocation7 [shape = 'u8[16384]{0}', space=vmem, size = 0x4000, scoped, tag = 'input window, operand 2, single buffered']
    #allocation8 [shape = 's32[1]{0}', space=sflag, size = 0x4, scoped, tag = 'scoped memory for tpu_custom_call.1']
    #allocation9 [shape = 'u8[8192]{0}', space=vmem, size = 0x2000, scoped, tag = 'input window, operand 3, single buffered']
    %9 = vsyncpa [#allocation6], 0
    %10 = vsyncpa [#allocation8], 0
    // Predicated region
    $region2: #{tpu_custom_call.1} parent=1 // pred_check
      _
    $region3: #{tpu_custom_call.1} parent=1 // pred_check_branch
      %12 = sbr.rel (0) target = $region5
    $region4: #{tpu_custom_call.1} parent=1 // pred_region
      %s14 = ssub.s32 32, 32
      %15 = vsyncadd [#allocation6], %s14
      %s17 = sshll.u32 [#allocation5], 4
      %s18 = int_to_ptr.vmem [resolvable:$true] %s17
      %20 = dma.hbm_to_vmem [thread:$0]  %s0, 32, %s18, [#allocation6]
    $region5: #{tpu_custom_call.1} parent=1 // pred_fallthru
      _
    // Predicated region
    $region6: #{tpu_custom_call.1} parent=1 // pred_check
      _
    $region7: #{tpu_custom_call.1} parent=1 // pred_check_branch
      %22 = sbr.rel (0) target = $region9
    $region8: #{tpu_custom_call.1} parent=1 // pred_region
      _
    $region9: #{tpu_custom_call.1} parent=1 // pred_fallthru
      _
    // Predicated region
    $region10: #{tpu_custom_call.1} parent=1 // pred_check
      _
    $region11: #{tpu_custom_call.1} parent=1 // pred_check_branch
      %24 = sbr.rel (0) target = $region13
    $region12: #{tpu_custom_call.1} parent=1 // pred_region
      %s26 = ssub.s32 512, 512
      %27 = vsyncadd [#allocation8], %s26
      %s28 = sshll.u32 [#allocation7], 4
      %s29 = int_to_ptr.vmem [resolvable:$true] %s28
      %34 = dma.hbm_to_vmem [thread:$0]  %s2, 512, %s29, [#allocation8], 128, 128, 8
    $region13: #{tpu_custom_call.1} parent=1 // pred_fallthru
      _
    // Predicated region
    $region14: #{tpu_custom_call.1} parent=1 // pred_check
      _
    $region15: #{tpu_custom_call.1} parent=1 // pred_check_branch
      %36 = sbr.rel (0) target = $region17
    $region16: #{tpu_custom_call.1} parent=1 // pred_region
      %s38 = ssub.s32 256, 256
      %39 = vsyncadd [#allocation8], %s38
      %s40 = sshll.u32 [#allocation9], 4
      %s41 = int_to_ptr.vmem [resolvable:$true] %s40
      %46 = dma.hbm_to_vmem [thread:$0]  %s3, 256, %s41, [#allocation8], 32, 32, 2
    $region17: #{tpu_custom_call.1} parent=1 // pred_fallthru
      _
    // Predicated region
    $region18: #{tpu_custom_call.1} parent=1 // pred_check
      _
    $region19: #{tpu_custom_call.1} parent=1 // pred_check_branch
      %48 = sbr.rel (0) target = $region21
    $region20: #{tpu_custom_call.1} parent=1 // pred_region
      %49 = dma.done [#allocation6], 32
    $region21: #{tpu_custom_call.1} parent=1 // pred_fallthru
      _
    // Predicated region
    $region22: #{tpu_custom_call.1} parent=1 // pred_check
      _
    $region23: #{tpu_custom_call.1} parent=1 // pred_check_branch
      %51 = sbr.rel (0) target = $region25
    $region24: #{tpu_custom_call.1} parent=1 // pred_region
      %52 = dma.done [#allocation8], 512
    $region25: #{tpu_custom_call.1} parent=1 // pred_fallthru
      _
    // Predicated region
    $region26: #{tpu_custom_call.1} parent=1 // pred_check
      _
    $region27: #{tpu_custom_call.1} parent=1 // pred_check_branch
      %54 = sbr.rel (0) target = $region29
    $region28: #{tpu_custom_call.1} parent=1 // pred_region
      %55 = dma.done [#allocation8], 256
    $region29: #{tpu_custom_call.1} parent=1 // pred_fallthru
      _
    %p56 = scmp.eq.s32.totalorder 0, 0
    // Predicated region
    $region30: #{tpu_custom_call.1} parent=1 // pred_check
      %p57 = pneg %p56
    $region31: #{tpu_custom_call.1} parent=1 // pred_check_branch
      %59 = sbr.rel (%p57) target = $region33
    $region32: #{tpu_custom_call.1} parent=1 // pred_region
      %v60 = vld [vmem:[#allocation5] sm:$0x3]
      %v61 = vld [vmem:[#allocation7] sm:$0xff]
      %v62 = vld [vmem:[#allocation7 + $0x8] sm:$0xff]
      %v63 = vld [vmem:[#allocation7 + $0x10] sm:$0xff]
      %v64 = vld [vmem:[#allocation7 + $0x18] sm:$0xff]
      %vm65 = vcmask 261120
      %v67 = vsel %vm65, %v60, 0
      %69 = vmatprep.subr.mxu0 0.0
      %70 = vmatpush1.msra.mxu0 %v61
      %71 = vmatprep.subr.mxu0 0.0
      %72 = vmatpush1.msra.mxu0 %v62
      %73 = vmatprep.subr.mxu0 0.0
      %74 = vmatpush1.msra.mxu0 %v63
      %75 = vmatprep.subr.mxu0 0.0
      %76 = vmatpush1.msra.mxu0 %v64
      %77 = vmatprep.subr.mxu0 0.0
      %78 = vmatpush1.msra.mxu0 0.0
      %79 = vmatprep.subr.mxu0 0.0
      %80 = vmatpush1.msra.mxu0 0.0
      %81 = vmatprep.subr.mxu0 0.0
      %82 = vmatpush1.msra.mxu0 0.0
      %83 = vmatprep.subr.mxu0 0.0
      %84 = vmatpush1.msra.mxu0 0.0
      %85 = vmatprep.subr.mxu0 0.0
      %86 = vmatpush1.msra.mxu0 0.0
      %87 = vmatprep.subr.mxu0 0.0
      %88 = vmatpush1.msra.mxu0 0.0
      %89 = vmatprep.subr.mxu0 0.0
      %90 = vmatpush1.msra.mxu0 0.0
      %91 = vmatprep.subr.mxu0 0.0
      %92 = vmatpush1.msra.mxu0 0.0
      %93 = vmatprep.subr.mxu0 0.0
      %94 = vmatpush1.msra.mxu0 0.0
      %95 = vmatprep.subr.mxu0 0.0
      %96 = vmatpush1.msra.mxu0 0.0
      %97 = vmatprep.subr.mxu0 0.0
      %98 = vmatpush1.msra.mxu0 0.0
      %99 = vmatprep.subr.mxu0 0.0
      %100 = vmatpush1.msra.mxu0 0.0
      %101 = vmatprep.subr.mxu0 0.0
      %102 = vmatpush1.msra.mxu0 0.0
      %103 = vmatprep.subr.mxu0 0.0
      %104 = vmatpush1.msra.mxu0 0.0
      %105 = vmatprep.subr.mxu0 0.0
      %106 = vmatpush1.msra.mxu0 0.0
      %107 = vmatprep.subr.mxu0 0.0
      %108 = vmatpush1.msra.mxu0 0.0
      %109 = vmatprep.subr.mxu0 0.0
      %110 = vmatpush1.msra.mxu0 0.0
      %111 = vmatprep.subr.mxu0 0.0
      %112 = vmatpush1.msra.mxu0 0.0
      %113 = vmatprep.subr.mxu0 0.0
      %114 = vmatpush1.msra.mxu0 0.0
      %115 = vmatprep.subr.mxu0 0.0
      %116 = vmatpush1.msra.mxu0 0.0
      %117 = vmatprep.subr.mxu0 0.0
      %118 = vmatpush1.msra.mxu0 0.0
      %119 = vmatprep.subr.mxu0 0.0
      %120 = vmatpush1.msra.mxu0 0.0
      %121 = vmatprep.subr.mxu0 0.0
      %122 = vmatpush1.msra.mxu0 0.0
      %123 = vmatprep.subr.mxu0 0.0
      %124 = vmatpush1.msra.mxu0 0.0
      %125 = vmatprep.subr.mxu0 0.0
      %126 = vmatpush1.msra.mxu0 0.0
      %127 = vmatprep.subr.mxu0 0.0
      %128 = vmatpush1.msra.mxu0 0.0
      %129 = vmatprep.subr.mxu0 0.0
      %130 = vmatpush1.msra.mxu0 0.0
      %131 = vmatprep.subr.mxu0 0.0
      %132 = vmatpush1.msra.mxu0 0.0
      %133 = vmatprep.mubr.f32.mxu0 0.0
      %134 = vmatmul.mubr.f32.gmra.mrb[0].mxu0 %v67
      %v135 = vpop.f32.mrb[0].mxu0
      %v136 = vadd.f32 0.0, %v135
      %v137 = vpop.f32.mrb[0].mxu0
      %138 = vdwg.mxu0
      %vm139 = vcmask 254976
      %140 = vst.msk [vmem:[#allocation2] sm:$0x3] %vm139, %v136
      %v141 = vld [vmem:[%s1] sm:$0x1]
      %v142 = vld [vmem:[#allocation5] sm:$0x3]
      %v144 = vsel %vm65, %v141, 0
      %v147 = vsel %vm65, %v142, 0
      %149 = vmatprep.subr.mxu0 0.0
      %150 = vmatpush1.xpose.msra.mxu0 %v147
      %151 = vmatprep.subr.mxu0 0.0
      %152 = vmatpush1.xpose.msra.mxu0 0.0
      %153 = vmatprep.subr.mxu0 0.0
      %154 = vmatpush1.xpose.msra.mxu0 0.0
      %155 = vmatprep.subr.mxu0 0.0
      %156 = vmatpush1.xpose.msra.mxu0 0.0
      %157 = vmatprep.subr.mxu0 0.0
      %158 = vmatpush1.xpose.msra.mxu0 0.0
      %159 = vmatprep.subr.mxu0 0.0
      %160 = vmatpush1.xpose.msra.mxu0 0.0
      %161 = vmatprep.subr.mxu0 0.0
      %162 = vmatpush1.xpose.msra.mxu0 0.0
      %163 = vmatprep.subr.mxu0 0.0
      %164 = vmatpush1.xpose.msra.mxu0 0.0
      %165 = vmatprep.subr.mxu0 0.0
      %166 = vmatpush1.xpose.msra.mxu0 0.0
      %167 = vmatprep.subr.mxu0 0.0
      %168 = vmatpush1.xpose.msra.mxu0 0.0
      %169 = vmatprep.subr.mxu0 0.0
      %170 = vmatpush1.xpose.msra.mxu0 0.0
      %171 = vmatprep.subr.mxu0 0.0
      %172 = vmatpush1.xpose.msra.mxu0 0.0
      %173 = vmatprep.subr.mxu0 0.0
      %174 = vmatpush1.xpose.msra.mxu0 0.0
      %175 = vmatprep.subr.mxu0 0.0
      %176 = vmatpush1.xpose.msra.mxu0 0.0
      %177 = vmatprep.subr.mxu0 0.0
      %178 = vmatpush1.xpose.msra.mxu0 0.0
      %179 = vmatprep.subr.mxu0 0.0
      %180 = vmatpush1.xpose.msra.mxu0 0.0
      %181 = vmatprep.subr.mxu0 0.0
      %182 = vmatpush1.xpose.msra.mxu0 0.0
      %183 = vmatprep.subr.mxu0 0.0
      %184 = vmatpush1.xpose.msra.mxu0 0.0
      %185 = vmatprep.subr.mxu0 0.0
      %186 = vmatpush1.xpose.msra.mxu0 0.0
      %187 = vmatprep.subr.mxu0 0.0
      %188 = vmatpush1.xpose.msra.mxu0 0.0
      %189 = vmatprep.subr.mxu0 0.0
      %190 = vmatpush1.xpose.msra.mxu0 0.0
      %191 = vmatprep.subr.mxu0 0.0
      %192 = vmatpush1.xpose.msra.mxu0 0.0
      %193 = vmatprep.subr.mxu0 0.0
      %194 = vmatpush1.xpose.msra.mxu0 0.0
      %195 = vmatprep.subr.mxu0 0.0
      %196 = vmatpush1.xpose.msra.mxu0 0.0
      %197 = vmatprep.subr.mxu0 0.0
      %198 = vmatpush1.xpose.msra.mxu0 0.0
      %199 = vmatprep.subr.mxu0 0.0
      %200 = vmatpush1.xpose.msra.mxu0 0.0
      %201 = vmatprep.subr.mxu0 0.0
      %202 = vmatpush1.xpose.msra.mxu0 0.0
      %203 = vmatprep.subr.mxu0 0.0
      %204 = vmatpush1.xpose.msra.mxu0 0.0
      %205 = vmatprep.subr.mxu0 0.0
      %206 = vmatpush1.xpose.msra.mxu0 0.0
      %207 = vmatprep.subr.mxu0 0.0
      %208 = vmatpush1.xpose.msra.mxu0 0.0
      %209 = vmatprep.subr.mxu0 0.0
      %210 = vmatpush1.xpose.msra.mxu0 0.0
      %211 = vmatprep.subr.mxu0 0.0
      %212 = vmatpush1.xpose.msra.mxu0 0.0
      %213 = vmatprep.mubr.f32.mxu0 0.0
      %214 = vmatmul.mubr.f32.gmra.mrb[0].mxu0 %v144
      %v215 = vpop.f32.mrb[0].mxu0
      %v216 = vadd.f32 0.0, %v215
      %v217 = vpop.f32.mrb[0].mxu0
      %218 = vdwg.mxu0
      %vm219 = vcmask 8192
      %220 = vst.msk [vmem:[#allocation3] sm:$0x1] %vm219, %v216
    $region33: #{tpu_custom_call.1} parent=1 // pred_fallthru
      _
    %v221 = vld [vmem:[#allocation9] sm:$0x3]
    %v222 = vld [vmem:[#allocation9 + $0x2] sm:$0x3]
    %v223 = vld [vmem:[#allocation9 + $0x4] sm:$0x3]
    %v224 = vld [vmem:[#allocation9 + $0x6] sm:$0x3]
    %v225 = vld [vmem:[#allocation9 + $0x8] sm:$0x3]
    %v226 = vld [vmem:[#allocation9 + $0xa] sm:$0x3]
    %v227 = vld [vmem:[#allocation9 + $0xc] sm:$0x3]
    %v228 = vld [vmem:[#allocation9 + $0xe] sm:$0x3]
    %v229 = vld [vmem:[#allocation2] sm:$0x3]
    %v230 = vmul.f32 %v221, %v229
    %v231 = vmul.f32 %v222, %v229
    %v232 = vmul.f32 %v223, %v229
    %v233 = vmul.f32 %v224, %v229
    %v234 = vmul.f32 %v225, %v229
    %v235 = vmul.f32 %v226, %v229
    %v236 = vmul.f32 %v227, %v229
    %v237 = vmul.f32 %v228, %v229
    %vm238 = vcmask 254976
    %v239 = vsel %vm238, %v230, 0.0
    %240 = vadd.xlane.f32.xlu0 %v239
    %v241 = vpop.xlane.xlu0 %240
    %v242 = vsel %vm238, %v231, 0.0
    %243 = vadd.xlane.f32.xlu0 %v242
    %v244 = vpop.xlane.xlu0 %243
    %v245 = vsel %vm238, %v232, 0.0
    %246 = vadd.xlane.f32.xlu0 %v245
    %v247 = vpop.xlane.xlu0 %246
    %v248 = vsel %vm238, %v233, 0.0
    %249 = vadd.xlane.f32.xlu0 %v248
    %v250 = vpop.xlane.xlu0 %249
    %v251 = vsel %vm238, %v234, 0.0
    %252 = vadd.xlane.f32.xlu0 %v251
    %v253 = vpop.xlane.xlu0 %252
    %v254 = vsel %vm238, %v235, 0.0
    %255 = vadd.xlane.f32.xlu0 %v254
    %v256 = vpop.xlane.xlu0 %255
    %v257 = vsel %vm238, %v236, 0.0
    %258 = vadd.xlane.f32.xlu0 %v257
    %v259 = vpop.xlane.xlu0 %258
    %v260 = vsel %vm238, %v237, 0.0
    %261 = vadd.xlane.f32.xlu0 %v260
    %v262 = vpop.xlane.xlu0 %261
    %v263 = vld [vmem:[#allocation3] sm:$0x1]
    %v265 = vlaneseq
    %v266 = vshrl.u32 %v265, 7
    %v267 = vsub.s32 0, %v266
    %v268 = vrot.slane %v263, %v267
    %270 = vbcast.lane.b32.xlu0 %v268, 256
    %v271 = vpop.permute.xlu0 %270
    %v273 = vadd.f32 %v241, %v271
    %v274 = vadd.f32 %v244, %v271
    %v275 = vadd.f32 %v247, %v271
    %v276 = vadd.f32 %v250, %v271
    %v277 = vadd.f32 %v253, %v271
    %v278 = vadd.f32 %v256, %v271
    %v279 = vadd.f32 %v259, %v271
    %v280 = vadd.f32 %v262, %v271
    %s281 = smul.u32 0, 8
    %290 = vset.pattern.permute.xlu0 0
    %291 = vperm.xlu0 %290, %v273
    %v292 = vpop.permute.xlu0 %291
    %293 = vset.pattern.permute.xlu0 0
    %294 = vperm.xlu0 %293, %v274
    %v295 = vpop.permute.xlu0 %294
    %296 = vset.pattern.permute.xlu0 0
    %297 = vperm.xlu0 %296, %v275
    %v298 = vpop.permute.xlu0 %297
    %299 = vset.pattern.permute.xlu0 0
    %300 = vperm.xlu0 %299, %v276
    %v301 = vpop.permute.xlu0 %300
    %302 = vset.pattern.permute.xlu0 0
    %303 = vperm.xlu0 %302, %v277
    %v304 = vpop.permute.xlu0 %303
    %305 = vset.pattern.permute.xlu0 0
    %306 = vperm.xlu0 %305, %v278
    %v307 = vpop.permute.xlu0 %306
    %308 = vset.pattern.permute.xlu0 0
    %309 = vperm.xlu0 %308, %v279
    %v310 = vpop.permute.xlu0 %309
    %311 = vset.pattern.permute.xlu0 0
    %312 = vperm.xlu0 %311, %v280
    %v313 = vpop.permute.xlu0 %312
    %v314 = vlaneseq
    %v315 = vand.u32 %v314, 127
    %v316 = vlaneseq
    %v317 = vshrl.u32 %v316, 7
    %v318 = vsub.s32 %v315, %v317
    %v319 = vrot.slane %v292, %v318
    %v320 = vlaneseq
    %v321 = vshrl.u32 %v320, 7
    %v322 = vsub.s32 %v315, %v321
    %v323 = vrot.slane %v295, %v322
    %v324 = vlaneseq
    %v325 = vshrl.u32 %v324, 7
    %v326 = vsub.s32 %v315, %v325
    %v327 = vrot.slane %v298, %v326
    %v328 = vlaneseq
    %v329 = vshrl.u32 %v328, 7
    %v330 = vsub.s32 %v315, %v329
    %v331 = vrot.slane %v301, %v330
    %v332 = vlaneseq
    %v333 = vshrl.u32 %v332, 7
    %v334 = vsub.s32 %v315, %v333
    %v335 = vrot.slane %v304, %v334
    %v336 = vlaneseq
    %v337 = vshrl.u32 %v336, 7
    %v338 = vsub.s32 %v315, %v337
    %v339 = vrot.slane %v307, %v338
    %v340 = vlaneseq
    %v341 = vshrl.u32 %v340, 7
    %v342 = vsub.s32 %v315, %v341
    %v343 = vrot.slane %v310, %v342
    %v344 = vlaneseq
    %v345 = vshrl.u32 %v344, 7
    %v346 = vsub.s32 %v315, %v345
    %v347 = vrot.slane %v313, %v346
    %vm348 = vcmask 1041409
    %v349 = vsel %vm348, %v323, %v319
    %vm350 = vcmask 1042434
    %v351 = vsel %vm350, %v327, %v349
    %vm352 = vcmask 1043459
    %v353 = vsel %vm352, %v331, %v351
    %vm354 = vcmask 1044484
    %v355 = vsel %vm354, %v335, %v353
    %vm356 = vcmask 1045509
    %v357 = vsel %vm356, %v339, %v355
    %vm358 = vcmask 1046534
    %v359 = vsel %vm358, %v343, %v357
    %vm360 = vcmask 1047559
    %v361 = vsel %vm360, %v347, %v359
    %s363 = scalar_lea.vmem [#allocation4], %s281
    %vm364 = vcmask 15360
    %365 = vst.msk [vmem:[%s363] sm:$0xff] %vm364, %v361
    // Predicated region
    $region34: #{tpu_custom_call.1} parent=1 // pred_check
      %p366 = pneg %p56
    $region35: #{tpu_custom_call.1} parent=1 // pred_check_branch
      %368 = sbr.rel (%p366) target = $region37
    $region36: #{tpu_custom_call.1} parent=1 // pred_region
      %v369 = vld [vmem:[#allocation4] sm:$0xff]
      %v370 = vsel %vm364, %v369, -inf
      %v371 = vrot.slane %v370, 4
      %v372 = vmax.f32 %v370, %v371
      %v373 = vrot.slane %v372, 2
      %v374 = vmax.f32 %v372, %v373
      %v375 = vrot.slane %v374, 1
      %v376 = vmax.f32 %v374, %v375
      %v377 = vsub.f32 %v369, %v376
      %v378 = vmul.f32 %v377, 1.442695
      %v379 = vpow.pop %v378
      %v380 = vsel %vm364, %v379, 0.0
      %v381 = vrot.slane %v380, 4
      %v382 = vadd.f32 %v380, %v381
      %v383 = vrot.slane %v382, 2
      %v384 = vadd.f32 %v382, %v383
      %v385 = vrot.slane %v384, 1
      %v386 = vadd.f32 %v384, %v385
      %v387 = vrcp.pop %v386
      %v388 = vmul.f32 %v386, %v387
      %v389 = vsub.f32 2.0, %v388
      %v390 = vmul.f32 %v387, %v389
      %v391 = vmul.f32 %v386, %v390
      %v392 = vsub.f32 2.0, %v391
      %v393 = vmul.f32 %v390, %v392
      %v394 = vmul.f32 %v379, %v393
      %395 = vst.msk [vmem:[%s4] sm:$0xff] %vm364, %v394
    $region37: #{tpu_custom_call.1} parent=1 // pred_fallthru
      _
    // Predicated region
    $region38: #{tpu_custom_call.1} parent=1 // pred_check
      _
    $region39: #{tpu_custom_call.1} parent=1 // pred_check_branch
      %397 = sbr.rel (0) target = $region41
    $region40: #{tpu_custom_call.1} parent=1 // pred_region
      _
    $region41: #{tpu_custom_call.1} parent=1 // pred_fallthru
      _
    // Predicated region
    $region42: #{tpu_custom_call.1} parent=1 // pred_check
      _
    $region43: #{tpu_custom_call.1} parent=1 // pred_check_branch
      %399 = sbr.rel (0) target = $region45
    $region44: #{tpu_custom_call.1} parent=1 // pred_region
      _
    $region45: #{tpu_custom_call.1} parent=1 // pred_fallthru
      _
    %400 = vsyncpa [#allocation6], 1
    %401 = vsyncpa [#allocation8], 1

</llo_original>
